<compile_context>
chip_gen: v6e
topology: v6e:2x2x1
jax: 0.10.0
libtpu: 0.0.40
codegen_flags: <defaults>
</compile_context>

<pallas_src>
import jax
import jax.numpy as jnp
from jax import lax
from jax.experimental import pallas as pl
from jax.experimental.pallas import tpu as pltpu

STATE_DIM = 18          # state vector indices 0..17 used by Program
NN_IN_LEN = 6           # arg_idx = [1, 2, 3, 4, 9, 17]
NN_OUT_LEN = 5          # target_idx = [5, 6, 7, 8, 17]
N_STEPS = 15            # self.steps = var(15)
STEPS = 15.0
COMPARISON_BAR = 0.0    # self.comparison_bar = var(0.0)

_LIN1_OUT = 32
_BATCH_BLOCK = 256      # lanes per grid step; vreg pressure (not VMEM) is the limiter

_SMEM_SPEC = pl.BlockSpec(memory_space=pltpu.MemorySpace.SMEM)


def _round_up(x, m):
    return ((x + m - 1) // m) * m


def _batch_blocking(batch):
    """Lane-dense batch blocking.

    bb is always a multiple of 128 (unmasked, lane-dense stores); for B > 128
    we guarantee >= 2 grid blocks so the "parallel" grid axis can shard across
    v7x's two TensorCores (no effect on single-TC v5e/v6e)."""
    if batch <= 128:
        bb = 128
    else:
        bb = min(_BATCH_BLOCK, _round_up(pl.cdiv(batch, 2), 128))
    n_blk = pl.cdiv(batch, bb)
    return bb, n_blk, n_blk * bb


# ----------------------------------------------------------------------------
# Shared in-kernel ConvSigmoid math, feature-major layout (features, batch).
# ----------------------------------------------------------------------------
def _nn_forward(x, w10, w11, b1c, w20, w21, b2c, W1b, W2, bl2, ones_row):
    """ConvSigmoid forward.  x: (6, Bb) feature-major -> sigmoid probs (5, Bb)."""
    # Conv1d(1,1,k=2), cross-correlation as in PyTorch: out[i] = w0*x[i] + w1*x[i+1] + b
    h1 = jnp.maximum(w10 * x[0:5, :] + w11 * x[1:6, :] + b1c, 0.0)        # (5, Bb)
    h2 = jnp.maximum(w20 * h1[0:4, :] + w21 * h1[1:5, :] + b2c, 0.0)      # (4, Bb)
    # Linear(4 -> 32) + ReLU, bias folded into the MXU dot: [W1 | bl1] @ [h2 ; 1]
    h2a = jnp.concatenate([h2, ones_row], axis=0)                          # (5, Bb)
    h3 = jnp.maximum(jnp.dot(W1b, h2a, preferred_element_type=jnp.float32), 0.0)  # (32, Bb)
    # Linear(32 -> 5) + Sigmoid (bias add is only 5 rows -> VPU add is fine)
    logits = jnp.dot(W2, h3, preferred_element_type=jnp.float32) + bl2     # (5, Bb)
    return jax.nn.sigmoid(logits)


def _unpack_conv(conv_ref):
    """Materialize the 6 conv scalars as (1,1) f32 arrays ONCE (hoist the
    SMEM-scalar -> vreg splat out of the unrolled loop)."""
    w10 = jnp.full((1, 1), conv_ref[0], jnp.float32)
    w11 = jnp.full((1, 1), conv_ref[1], jnp.float32)
    b1c = jnp.full((1, 1), conv_ref[2], jnp.float32)
    w20 = jnp.full((1, 1), conv_ref[3], jnp.float32)
    w21 = jnp.full((1, 1), conv_ref[4], jnp.float32)
    b2c = jnp.full((1, 1), conv_ref[5], jnp.float32)
    return w10, w11, b1c, w20, w21, b2c


# ----------------------------------------------------------------------------
# Kernel 1: standalone classifier ('single_nn_learning' path)
# ----------------------------------------------------------------------------
def _classifier_kernel(conv_ref, w1b_ref, w2b_ref, x_ref, o_ref):
    bb = x_ref.shape[1]
    w10, w11, b1c, w20, w21, b2c = _unpack_conv(conv_ref)
    W1b = w1b_ref[...]                                 # (32, 5)  = [W1 | bl1]
    W2 = w2b_ref[:, 0:_LIN1_OUT]                       # (5, 32)
    bl2 = w2b_ref[:, _LIN1_OUT:_LIN1_OUT + 1]          # (5, 1)
    ones_row = jnp.ones((1, bb), jnp.float32)
    o_ref[...] = _nn_forward(x_ref[...], w10, w11, b1c, w20, w21, b2c,
                             W1b, W2, bl2, ones_row)


# ----------------------------------------------------------------------------
# Kernel 2: fused program interpreter (default path) — full 15-step loop with
# the state resident in VMEM/vregs.
# ----------------------------------------------------------------------------
def _program_kernel(conv_ref, w1b_ref, w2b_ref, s_ref, o_ref):
    bb = s_ref.shape[1]

    # Loop-invariant weights, hoisted once before the unrolled loop.
    w10, w11, b1c, w20, w21, b2c = _unpack_conv(conv_ref)
    W1b = w1b_ref[...]                                 # (32, 5)  = [W1 | bl1]
    W2 = w2b_ref[:, 0:_LIN1_OUT]                       # (5, 32)
    bl2 = w2b_ref[:, _LIN1_OUT:_LIN1_OUT + 1]          # (5, 1)
    ones_row = jnp.ones((1, bb), jnp.float32)

    # Regrouped carried state (only rows READ inside the loop are carried):
    #   R rows: [i, x1, y1, x2, y2, stage, p17, pad]  -> one aligned 8-sublane tile;
    #           NN input [1,2,3,4,9,17] is the contiguous slice R[1:7].
    #   P rows: [p5, p6, p7, p8]                      -> write-only rows 5..8.
    # Write-only rows 10..16 (dist, a..f) are reconstructed after the loop:
    # they are pure functions of the final R / P, so they don't need to be
    # concatenated + masked in every unrolled iteration.
    R0 = jnp.concatenate(
        [s_ref[0:5, :], s_ref[9:10, :], s_ref[17:18, :],
         jnp.zeros((1, bb), jnp.float32)], axis=0)     # (8, Bb)
    P0 = s_ref[5:9, :]                                 # (4, Bb)

    bar = COMPARISON_BAR

    def body(_, carry):
        R, P = carry
        active = R[0:1, :] < STEPS                     # While(target_idx=[0], test=steps)

        # assign_branch_probability: nn_classifier(state[[1,2,3,4,9,17]])
        probs = _nn_forward(R[1:7, :], w10, w11, b1c, w20, w21, b2c,
                            W1b, W2, bl2, ones_row)    # (5, Bb)
        p5, p6, p7, p8 = probs[0:1], probs[1:2], probs[2:3], probs[3:4]
        p17 = probs[4:5]

        # assign_comparison_block (pairwise probability differences)
        a = p6 - p5
        b = p7 - p5
        c = p8 - p5
        d = p7 - p6
        e = p8 - p6
        f = p8 - p7

        # ifelse_argmax_ITE: nested IfElse tree (cruise / left / straight / right)
        cruise = (a <= bar) & (b <= bar) & (c <= bar)
        left = (a > bar) & (d <= bar) & (e <= bar)
        straight = (((a <= bar) & (b > bar) & (f <= bar)) |
                    ((a > bar) & (d > bar) & (f <= bar)))
        is_right = jnp.logical_not(cruise | left | straight)
        dx1 = jnp.where(left, -5.0, jnp.where(is_right, 5.0, 0.0))
        stage = jnp.where(cruise, 0.0,
                          jnp.where(left, 1.0,
                                    jnp.where(straight, 2.0, 3.0)))

        R_new = jnp.concatenate(
            [R[0:1, :] + 1.0,            # i   (assign_update_i)
             R[1:2, :] + dx1,            # x1  (update_left/right block)
             R[2:3, :] + 5.0,            # y1  (assign_y1)
             R[3:4, :] + 5.0,            # x2  (assign_x2)
             R[4:5, :],                  # y2  (unchanged)
             stage,                      # row 9
             p17,                        # row 17
             R[7:8, :]],                 # pad
            axis=0)                      # (8, Bb)

        R = jnp.where(active, R_new, R)                # inactive lanes keep old state
        P = jnp.where(active, probs[0:4, :], P)
        return R, P

    # Fixed trip count: i increases by 1 per active step, so 15 masked
    # iterations reproduce the While semantics (requires initial i >= 0).
    R, P = lax.fori_loop(0, N_STEPS, body, (R0, P0), unroll=True)

    # Reconstruct write-only rows from the final carried state.
    ran = R0[0:1, :] < STEPS          # did the While body execute at least once?
    # assign_distance: pure function of the final positions; if the loop never
    # ran this equals the prologue assign_distance on the input state.
    dist = (R[1:2, :] - R[3:4, :]) ** 2 + (R[2:3, :] - R[4:5, :]) ** 2     # row 10
    p5, p6, p7, p8 = P[0:1, :], P[1:2, :], P[2:3, :], P[3:4, :]
    cmp_rows = jnp.concatenate(
        [p6 - p5, p7 - p5, p8 - p5, p7 - p6, p8 - p6, p8 - p7], axis=0)    # rows 11..16
    cmp_rows = jnp.where(ran, cmp_rows, s_ref[11:17, :])

    o_ref[...] = jnp.concatenate(
        [R[0:5, :],       # rows 0..4   (i, x1, y1, x2, y2)
         P,               # rows 5..8   (branch probabilities)
         R[5:6, :],       # row  9      (stage)
         dist,            # row 10      (distance)
         cmp_rows,        # rows 11..16 (a..f)
         R[6:7, :]],      # row 17      (p17)
        axis=0)
    # TODO(synk): Trajectory(target_idx=[...]) only records states for the DSE
    # trajectory loss; it does not mutate the state, so it is omitted.


# ----------------------------------------------------------------------------
# Wrappers.  The *_fm entry points are feature-major (feature, batch) and avoid
# boundary transposes; the plain wrappers keep the PyTorch batch-major layout.
# ----------------------------------------------------------------------------
def conv_sigmoid_forward_fm(x_fm, params):
    """'single_nn_learning' path, feature-major: x (6, B) -> (5, B)."""
    B = x_fm.shape[1]
    bb, n_blk, b_pad = _batch_blocking(B)
    x = x_fm.astype(jnp.float32)
    if b_pad != B:
        x = jnp.pad(x, ((0, 0), (0, b_pad - B)))
    out = pl.pallas_call(
        _classifier_kernel,
        out_shape=jax.ShapeDtypeStruct((NN_OUT_LEN, b_pad), jnp.float32),
        grid=(n_blk,),
        in_specs=[
            _SMEM_SPEC,                                                   # conv scalars
            pl.BlockSpec((_LIN1_OUT, 5), lambda i: (0, 0)),               # [W1 | bl1]
            pl.BlockSpec((NN_OUT_LEN, _LIN1_OUT + 1), lambda i: (0, 0)),  # [W2 | bl2]
            pl.BlockSpec((NN_IN_LEN, bb), lambda i: (0, i)),              # x (batch on lanes)
        ],
        out_specs=pl.BlockSpec((NN_OUT_LEN, bb), lambda i: (0, i)),
        compiler_params=pltpu.CompilerParams(dimension_semantics=("parallel",)),
    )(params["conv"], params["W1b"], params["W2b"], x)
    return out[:, :B]


def conv_sigmoid_forward(x_ncw, params):
    """'single_nn_learning' path, PyTorch layout: x (B, 1, 6) NCW -> (B, 1, 5)."""
    B = x_ncw.shape[0]
    out_fm = conv_sigmoid_forward_fm(x_ncw.reshape(B, NN_IN_LEN).T, params)
    return out_fm.T.reshape(B, 1, NN_OUT_LEN)


def program_forward_fm(state_fm, params):
    """Default Program path, feature-major: state (18, B) -> (18, B).
    Prefer this in training/rollout loops (no per-call HBM transposes)."""
    B = state_fm.shape[1]
    bb, n_blk, b_pad = _batch_blocking(B)
    s = state_fm.astype(jnp.float32)
    if b_pad != B:
        s = jnp.pad(s, ((0, 0), (0, b_pad - B)))
    out = pl.pallas_call(
        _program_kernel,
        out_shape=jax.ShapeDtypeStruct((STATE_DIM, b_pad), jnp.float32),
        grid=(n_blk,),
        in_specs=[
            _SMEM_SPEC,                                                   # conv scalars
            pl.BlockSpec((_LIN1_OUT, 5), lambda i: (0, 0)),               # [W1 | bl1]
            pl.BlockSpec((NN_OUT_LEN, _LIN1_OUT + 1), lambda i: (0, 0)),  # [W2 | bl2]
            pl.BlockSpec((STATE_DIM, bb), lambda i: (0, i)),              # state block
        ],
        out_specs=pl.BlockSpec((STATE_DIM, bb), lambda i: (0, i)),
        compiler_params=pltpu.CompilerParams(dimension_semantics=("parallel",)),
    )(params["conv"], params["W1b"], params["W2b"], s)
    return out[:, :B]


def program_forward(state, params):
    """Default Program path, PyTorch layout: state (B, 18) -> (B, 18).
    NOTE: matches the reference While only for initial i = state[:, 0] >= 0."""
    return program_forward_fm(state.T, params).T


# ----------------------------------------------------------------------------
# Deterministic parameter init (synthetic; shapes from ConvSigmoid.__init__)
# ----------------------------------------------------------------------------
def init_params(key):
    ks = jax.random.split(key, 8)
    scale = 0.3
    w1c = scale * jax.random.normal(ks[0], (2,), jnp.float32)   # Conv1d(1,1,2).weight
    b1c = scale * jax.random.normal(ks[1], (1,), jnp.float32)
    w2c = scale * jax.random.normal(ks[2], (2,), jnp.float32)   # Conv1d(1,1,2).weight
    b2c = scale * jax.random.normal(ks[3], (1,), jnp.float32)
    W1 = scale * jax.random.normal(ks[4], (_LIN1_OUT, 4), jnp.float32)           # Linear(4,32)
    bl1 = scale * jax.random.normal(ks[5], (_LIN1_OUT, 1), jnp.float32)
    W2 = scale * jax.random.normal(ks[6], (NN_OUT_LEN, _LIN1_OUT), jnp.float32)  # Linear(32,5)
    bl2 = scale * jax.random.normal(ks[7], (NN_OUT_LEN, 1), jnp.float32)
    conv = jnp.concatenate([w1c, b1c, w2c, b2c, jnp.zeros((2,), jnp.float32)])   # (8,) SMEM pack
    return {
        "conv": conv,                                   # [w10, w11, b1, w20, w21, b2, 0, 0]
        "W1b": jnp.concatenate([W1, bl1], axis=1),      # (32, 5)  = [W1 | bl1]
        "W2b": jnp.concatenate([W2, bl2], axis=1),      # (5, 33)  = [W2 | bl2]
    }


def _classifier_ref(x_ncw, params):
    """Pure-JAX reference for the ConvSigmoid path (correctness check)."""
    c = params["conv"]
    W1, bl1 = params["W1b"][:, :4], params["W1b"][:, 4]
    W2, bl2 = params["W2b"][:, :_LIN1_OUT], params["W2b"][:, _LIN1_OUT]
    hi = jax.lax.Precision.HIGHEST
    x = x_ncw.reshape(-1, NN_IN_LEN).astype(jnp.float32)
    h1 = jnp.maximum(c[0] * x[:, 0:5] + c[1] * x[:, 1:6] + c[2], 0.0)
    h2 = jnp.maximum(c[3] * h1[:, 0:4] + c[4] * h1[:, 1:5] + c[5], 0.0)
    h3 = jnp.maximum(jnp.dot(h2, W1.T, precision=hi) + bl1, 0.0)
    return jax.nn.sigmoid(jnp.dot(h3, W2.T, precision=hi) + bl2).reshape(-1, 1, NN_OUT_LEN)


if __name__ == "__main__":
    key = jax.random.PRNGKey(0)
    pkey, xkey, skey, s2key = jax.random.split(key, 4)
    params = init_params(pkey)

    B = 2

    # Path 1: 'single_nn_learning' -> ConvSigmoid on NCW input (B, 1, 6)
    x_nn = jax.random.normal(xkey, (B, 1, NN_IN_LEN), jnp.float32)
    nn_out = jax.jit(lambda x: conv_sigmoid_forward(x, params))(x_nn)
    nn_out = jax.block_until_ready(nn_out)
    assert nn_out.shape == (B, 1, NN_OUT_LEN)
    assert bool(jnp.all((nn_out >= 0.0) & (nn_out <= 1.0)))
    nn_ref = _classifier_ref(x_nn, params)
    assert bool(jnp.allclose(nn_out, nn_ref, atol=1e-3, rtol=1e-3))

    # Path 2: default program interpreter on state vector (B, 18)
    state0 = jnp.zeros((B, STATE_DIM), jnp.float32)
    state0 = state0.at[:, 1:5].set(10.0 * jax.random.normal(skey, (B, 4), jnp.float32))
    prog_out = jax.jit(lambda s: program_forward(s, params))(state0)
    prog_out = jax.block_until_ready(prog_out)
    assert prog_out.shape == (B, STATE_DIM)
    assert bool(jnp.all(jnp.isfinite(prog_out)))
    assert bool(jnp.all(prog_out[:, 0] == STEPS))           # loop ran exactly 15 masked steps
    assert bool(jnp.all((prog_out[:, 5:9] >= 0.0) & (prog_out[:, 5:9] <= 1.0)))
    assert bool(jnp.all((prog_out[:, 17] >= 0.0) & (prog_out[:, 17] <= 1.0)))

    # Multi-block grid path (>= 2 blocks -> exercises the v7x dual-core sharding)
    B2 = 300
    state1 = jnp.zeros((B2, STATE_DIM), jnp.float32)
    state1 = state1.at[:, 1:5].set(10.0 * jax.random.normal(s2key, (B2, 4), jnp.float32))
    prog_out2 = jax.jit(lambda s: program_forward(s, params))(state1)
    prog_out2 = jax.block_until_ready(prog_out2)
    assert prog_out2.shape == (B2, STATE_DIM)
    assert bool(jnp.all(prog_out2[:, 0] == STEPS))

    print("KERNEL_OK")
</pallas_src>

<mosaic_0001>
module attributes {stable_mosaic.version = 11 : i64} {
  func.func @_classifier_kernel(%arg0: i32, %arg1: memref<8xf32, #tpu.memory_space<smem>>, %arg2: memref<32x5xf32, #tpu.memory_space<vmem>>, %arg3: memref<5x33xf32, #tpu.memory_space<vmem>>, %arg4: memref<6x128xf32, #tpu.memory_space<vmem>>, %arg5: memref<5x128xf32, #tpu.memory_space<vmem>>) attributes {dimension_semantics = [#tpu.dimension_semantics<parallel>], iteration_bounds = array<i64: 1>, scalar_prefetch = 0 : i64, scratch_operands = 0 : i64, tpu.core_type = #tpu.core_type<tc>, window_params = [{transform_indices = @transform_0, window_bounds = array<i64: 8>}, {pipeline_mode = #tpu.pipeline_mode<synchronous>, transform_indices = @transform_1, window_bounds = array<i64: 32, 5>}, {pipeline_mode = #tpu.pipeline_mode<synchronous>, transform_indices = @transform_2, window_bounds = array<i64: 5, 33>}, {transform_indices = @transform_3, window_bounds = array<i64: 6, 128>}, {transform_indices = @transform_4, window_bounds = array<i64: 5, 128>}]} {
    %c0 = arith.constant 0 : index
    %0 = memref.load %arg1[%c0] : memref<8xf32, #tpu.memory_space<smem>>
    %1 = vector.broadcast %0 : f32 to vector<1x1xf32>
    %c1 = arith.constant 1 : index
    %2 = memref.load %arg1[%c1] : memref<8xf32, #tpu.memory_space<smem>>
    %3 = vector.broadcast %2 : f32 to vector<1x1xf32>
    %c2 = arith.constant 2 : index
    %4 = memref.load %arg1[%c2] : memref<8xf32, #tpu.memory_space<smem>>
    %5 = vector.broadcast %4 : f32 to vector<1x1xf32>
    %c3 = arith.constant 3 : index
    %6 = memref.load %arg1[%c3] : memref<8xf32, #tpu.memory_space<smem>>
    %7 = vector.broadcast %6 : f32 to vector<1x1xf32>
    %c4 = arith.constant 4 : index
    %8 = memref.load %arg1[%c4] : memref<8xf32, #tpu.memory_space<smem>>
    %9 = vector.broadcast %8 : f32 to vector<1x1xf32>
    %c5 = arith.constant 5 : index
    %10 = memref.load %arg1[%c5] : memref<8xf32, #tpu.memory_space<smem>>
    %11 = vector.broadcast %10 : f32 to vector<1x1xf32>
    %c0_0 = arith.constant 0 : index
    %c0_1 = arith.constant 0 : index
    %12 = vector.load %arg2[%c0_0, %c0_1] : memref<32x5xf32, #tpu.memory_space<vmem>>, vector<32x5xf32>
    %c0_2 = arith.constant 0 : index
    %c0_3 = arith.constant 0 : index
    %13 = vector.load %arg3[%c0_2, %c0_3] : memref<5x33xf32, #tpu.memory_space<vmem>>, vector<5x32xf32>
    %c0_4 = arith.constant 0 : index
    %c32 = arith.constant 32 : index
    %14 = vector.load %arg3[%c0_4, %c32] : memref<5x33xf32, #tpu.memory_space<vmem>>, vector<5x1xf32>
    %cst = arith.constant 1.000000e+00 : f32
    %15 = vector.broadcast %cst : f32 to vector<1x128xf32>
    %c0_5 = arith.constant 0 : index
    %c0_6 = arith.constant 0 : index
    %16 = vector.load %arg4[%c0_5, %c0_6] : memref<6x128xf32, #tpu.memory_space<vmem>>, vector<6x128xf32>
    %17 = vector.extract_strided_slice %16 {offsets = [0, 0], sizes = [5, 128], strides = [1, 1]} : vector<6x128xf32> to vector<5x128xf32>
    %18 = vector.broadcast %1 : vector<1x1xf32> to vector<5x128xf32>
    %19 = arith.mulf %18, %17 : vector<5x128xf32>
    %20 = vector.extract_strided_slice %16 {offsets = [1, 0], sizes = [5, 128], strides = [1, 1]} : vector<6x128xf32> to vector<5x128xf32>
    %21 = vector.broadcast %3 : vector<1x1xf32> to vector<5x128xf32>
    %22 = arith.mulf %21, %20 : vector<5x128xf32>
    %23 = arith.addf %19, %22 : vector<5x128xf32>
    %24 = vector.broadcast %5 : vector<1x1xf32> to vector<5x128xf32>
    %25 = arith.addf %23, %24 : vector<5x128xf32>
    %cst_7 = arith.constant 0.000000e+00 : f32
    %26 = vector.broadcast %cst_7 : f32 to vector<5x128xf32>
    %27 = arith.maximumf %25, %26 : vector<5x128xf32>
    %28 = vector.extract_strided_slice %27 {offsets = [0, 0], sizes = [4, 128], strides = [1, 1]} : vector<5x128xf32> to vector<4x128xf32>
    %29 = vector.broadcast %7 : vector<1x1xf32> to vector<4x128xf32>
    %30 = arith.mulf %29, %28 : vector<4x128xf32>
    %31 = vector.extract_strided_slice %27 {offsets = [1, 0], sizes = [4, 128], strides = [1, 1]} : vector<5x128xf32> to vector<4x128xf32>
    %32 = vector.broadcast %9 : vector<1x1xf32> to vector<4x128xf32>
    %33 = arith.mulf %32, %31 : vector<4x128xf32>
    %34 = arith.addf %30, %33 : vector<4x128xf32>
    %35 = vector.broadcast %11 : vector<1x1xf32> to vector<4x128xf32>
    %36 = arith.addf %34, %35 : vector<4x128xf32>
    %cst_8 = arith.constant 0.000000e+00 : f32
    %37 = vector.broadcast %cst_8 : f32 to vector<4x128xf32>
    %38 = arith.maximumf %36, %37 : vector<4x128xf32>
    %39 = tpu.concatenate %38, %15 in 0 : vector<4x128xf32>, vector<1x128xf32> -> vector<5x128xf32>
    %cst_9 = arith.constant dense<0.000000e+00> : vector<32x128xf32>
    %40 = tpu.matmul %12, %39, %cst_9 {dimension_numbers = #tpu.dot_dimension_numbers<[1], [0], [0], [1], [0, 0, 1, 1], [], []>} : vector<32x5xf32>, vector<5x128xf32>, vector<32x128xf32> -> vector<32x128xf32>
    %cst_10 = arith.constant 0.000000e+00 : f32
    %41 = vector.broadcast %cst_10 : f32 to vector<32x128xf32>
    %42 = arith.maximumf %40, %41 : vector<32x128xf32>
    %cst_11 = arith.constant dense<0.000000e+00> : vector<5x128xf32>
    %43 = tpu.matmul %13, %42, %cst_11 {dimension_numbers = #tpu.dot_dimension_numbers<[1], [0], [0], [1], [0, 0, 1, 1], [], []>} : vector<5x32xf32>, vector<32x128xf32>, vector<5x128xf32> -> vector<5x128xf32>
    %44 = vector.broadcast %14 : vector<5x1xf32> to vector<5x128xf32>
    %45 = arith.addf %43, %44 : vector<5x128xf32>
    %46 = arith.negf %45 : vector<5x128xf32>
    %47 = math.exp %46 : vector<5x128xf32>
    %cst_12 = arith.constant 1.000000e+00 : f32
    %48 = vector.broadcast %cst_12 : f32 to vector<5x128xf32>
    %49 = arith.addf %48, %47 : vector<5x128xf32>
    %50 = arith.divf %48, %49 : vector<5x128xf32>
    %c0_13 = arith.constant 0 : index
    %c0_14 = arith.constant 0 : index
    %51 = vector.load %arg5[%c0_13, %c0_14] : memref<5x128xf32, #tpu.memory_space<vmem>>, vector<5x128xf32>
    tpu.vector_store %arg5[%c0_13, %c0_14], %50 {strides = array<i32>} : memref<5x128xf32, #tpu.memory_space<vmem>>, vector<5x128xf32>,
    return
  }
  func.func @transform_0(%arg0: i32) -> i32 {
    %c0_i32 = arith.constant 0 : i32
    %c0_i32_0 = arith.constant 0 : i32
    return %c0_i32 : i32
  }
  func.func @transform_1(%arg0: i32) -> (i32, i32) {
    %c0_i32 = arith.constant 0 : i32
    %c0_i32_0 = arith.constant 0 : i32
    %c0_i32_1 = arith.constant 0 : i32
    return %c0_i32, %c0_i32_0 : i32, i32
  }
  func.func @transform_2(%arg0: i32) -> (i32, i32) {
    %c0_i32 = arith.constant 0 : i32
    %c0_i32_0 = arith.constant 0 : i32
    %c0_i32_1 = arith.constant 0 : i32
    return %c0_i32, %c0_i32_0 : i32, i32
  }
  func.func @transform_3(%arg0: i32) -> (i32, i32) {
    %c0_i32 = arith.constant 0 : i32
    %c0_i32_0 = arith.constant 0 : i32
    return %c0_i32, %arg0 : i32, i32
  }
  func.func @transform_4(%arg0: i32) -> (i32, i32) {
    %c0_i32 = arith.constant 0 : i32
    %c0_i32_0 = arith.constant 0 : i32
    return %c0_i32, %arg0 : i32, i32
  }
}

</mosaic_0001>

<llo_original>
// kernel: _lambda_.1
$region0: #{_lambda_.1}
  #allocation0 [shape = 'u32[]', space=smem, size = 0x4, offset = 0x4, fixed_abs, tag = 'smem constant byte address 0x4 - core index']
  #allocation1 [shape = 'u32[144,128]{1,0:T(1,128)}', space=vmem, size = 0x12000, scoped, tag = 'internal scratch']
  %s0 = inlined_call_operand.vmem [shape: f32[8], index: 0, kind: input, shape index: {}]
  %s1 = inlined_call_operand.vmem [shape: f32[32,5], index: 1, kind: input, shape index: {}]
  %s2 = inlined_call_operand.hbm [shape: f32[5,33], index: 2, kind: input, shape index: {}]
  %s3 = inlined_call_operand.vmem [shape: f32[6,128], index: 3, kind: input, shape index: {}]
  %s4 = inlined_call_operand.vmem [shape: f32[5,128], index: 4, kind: output, shape index: {}]
  %s5 = sld [smem:[#allocation0]]
  $region34: #{_lambda_.1} parent=0
    _
  %s7 = ssub.s32 1, %s5
  %s8 = scalar_select 0, %s7, %s5
  $region1: #{_lambda_.1} parent=0
    #allocation2 [shape = 'u8[512]{0}', space=smem, size = 0x200, scoped, tag = 'input window, operand 0, single buffered']
    #allocation3 [shape = 's32[1]{0}', space=sflag, size = 0x4, scoped, tag = 'scoped memory for _lambda_.1']
    #allocation4 [shape = 's32[1]{0}', space=sflag, size = 0x4, scoped, tag = 'scoped memory for _lambda_.1']
    #allocation5 [shape = 'u8[4096]{0}', space=vmem, size = 0x1000, scoped, tag = 'input window, operand 2, single buffered']
    %9 = vsyncpa [#allocation4], 0
    %10 = vsyncpa [#allocation3], 0
    // Predicated region
    $region2: #{_lambda_.1} parent=1 // pred_check
      _
    $region3: #{_lambda_.1} parent=1 // pred_check_branch
      %12 = sbr.rel (0) target = $region5
    $region4: #{_lambda_.1} parent=1 // pred_region
      %s14 = ssub.s32 16, 16
      %15 = vsyncadd [#allocation4], %s14
      %s17 = sshll.u32 %s0, 4
      %s18 = int_to_ptr.vmem [resolvable:$true] %s17
      %20 = dma.vmem_to_smem %s18, 16, [#allocation2], [#allocation4]
    $region5: #{_lambda_.1} parent=1 // pred_fallthru
      _
    // Predicated region
    $region6: #{_lambda_.1} parent=1 // pred_check
      _
    $region7: #{_lambda_.1} parent=1 // pred_check_branch
      %22 = sbr.rel (0) target = $region9
    $region8: #{_lambda_.1} parent=1 // pred_region
      _
    $region9: #{_lambda_.1} parent=1 // pred_fallthru
      _
    // Predicated region
    $region10: #{_lambda_.1} parent=1 // pred_check
      _
    $region11: #{_lambda_.1} parent=1 // pred_check_branch
      %24 = sbr.rel (0) target = $region13
    $region12: #{_lambda_.1} parent=1 // pred_region
      %s26 = ssub.s32 128, 128
      %27 = vsyncadd [#allocation3], %s26
      %s29 = sshll.u32 [#allocation5], 4
      %s30 = int_to_ptr.vmem [resolvable:$true] %s29
      %32 = dma.hbm_to_vmem [thread:$0]  %s2, 128, %s30, [#allocation3]
    $region13: #{_lambda_.1} parent=1 // pred_fallthru
      _
    // Predicated region
    $region14: #{_lambda_.1} parent=1 // pred_check
      _
    $region15: #{_lambda_.1} parent=1 // pred_check_branch
      %34 = sbr.rel (0) target = $region17
    $region16: #{_lambda_.1} parent=1 // pred_region
      _
    $region17: #{_lambda_.1} parent=1 // pred_fallthru
      _
    // Predicated region
    $region18: #{_lambda_.1} parent=1 // pred_check
      _
    $region19: #{_lambda_.1} parent=1 // pred_check_branch
      %36 = sbr.rel (0) target = $region21
    $region20: #{_lambda_.1} parent=1 // pred_region
      %37 = dma.done [#allocation4], 16
    $region21: #{_lambda_.1} parent=1 // pred_fallthru
      _
    // Predicated region
    $region22: #{_lambda_.1} parent=1 // pred_check
      _
    $region23: #{_lambda_.1} parent=1 // pred_check_branch
      %39 = sbr.rel (0) target = $region25
    $region24: #{_lambda_.1} parent=1 // pred_region
      %40 = dma.done [#allocation3], 128
    $region25: #{_lambda_.1} parent=1 // pred_fallthru
      _
    %41 = sfence
    %s42 = sld [smem:[#allocation2]]
    %s43 = sld [smem:[#allocation2 + $0x1]]
    %s44 = sld [smem:[#allocation2 + $0x2]]
    %s45 = sld [smem:[#allocation2 + $0x3]]
    %s46 = sld [smem:[#allocation2 + $0x4]]
    %s47 = sld [smem:[#allocation2 + $0x5]]
    %v48 = vld [vmem:[%s1] sm:$0xff]
    %v49 = vld [vmem:[%s1 + $0x8] sm:$0xff]
    %v50 = vld [vmem:[%s1 + $0x10] sm:$0xff]
    %v51 = vld [vmem:[%s1 + $0x18] sm:$0xff]
    %v52 = vld [vmem:[#allocation5] sm:$0x1f]
    %v53 = vld [vmem:[%s3] sm:$0x3f]
    %v54 = vstv %s42
    %v55 = vmul.f32 %v54, %v53
    %v56 = vstv %s43
    %v57 = vmul.f32 %v56, %v53
    %v59 = vrot.slane %v57, 1
    %v61 = vadd.f32 %v55, %v59
    %v62 = vstv %s44
    %v63 = vadd.f32 %v61, %v62
    %v64 = vmax.f32 %v63, 0.0
    %v65 = vstv %s45
    %v66 = vmul.f32 %v65, %v64
    %v67 = vstv %s46
    %v68 = vmul.f32 %v67, %v64
    %v70 = vrot.slane %v68, 1
    %v72 = vadd.f32 %v66, %v70
    %v73 = vstv %s47
    %v74 = vadd.f32 %v72, %v73
    %v75 = vmax.f32 %v74, 0.0
    %vm76 = vcmask 1043456
    %v77 = vsel %vm76, %v75, 1.0
    %vm78 = vcmask 39936
    %v80 = vsel %vm78, %v48, 0
    %v83 = vsel %vm78, %v49, 0
    %v86 = vsel %vm78, %v50, 0
    %v89 = vsel %vm78, %v51, 0
    %vm91 = vcmask 1044480
    %v93 = vsel %vm91, %v77, 0
    %95 = vmatprep.subr.mxu0 0.0
    %96 = vmatpush1.msra.mxu0 0.0
    %97 = vmatprep.subr.mxu0 0.0
    %98 = vmatpush1.msra.mxu0 0.0
    %99 = vmatprep.subr.mxu0 0.0
    %100 = vmatpush1.msra.mxu0 0.0
    %101 = vmatprep.subr.mxu0 0.0
    %102 = vmatpush1.msra.mxu0 0.0
    %103 = vmatprep.subr.mxu0 0.0
    %104 = vmatpush1.msra.mxu0 0.0
    %105 = vmatprep.subr.mxu0 0.0
    %106 = vmatpush1.msra.mxu0 0.0
    %107 = vmatprep.subr.mxu0 0.0
    %108 = vmatpush1.msra.mxu0 0.0
    %109 = vmatprep.subr.mxu0 0.0
    %110 = vmatpush1.msra.mxu0 0.0
    %111 = vmatprep.subr.mxu0 0.0
    %112 = vmatpush1.msra.mxu0 0.0
    %113 = vmatprep.subr.mxu0 0.0
    %114 = vmatpush1.msra.mxu0 0.0
    %115 = vmatprep.subr.mxu0 0.0
    %116 = vmatpush1.msra.mxu0 0.0
    %117 = vmatprep.subr.mxu0 0.0
    %118 = vmatpush1.msra.mxu0 0.0
    %119 = vmatprep.subr.mxu0 0.0
    %120 = vmatpush1.msra.mxu0 0.0
    %121 = vmatprep.subr.mxu0 0.0
    %122 = vmatpush1.msra.mxu0 0.0
    %123 = vmatprep.subr.mxu0 0.0
    %124 = vmatpush1.msra.mxu0 0.0
    %125 = vmatprep.subr.mxu0 0.0
    %126 = vmatpush1.msra.mxu0 %v93
    %127 = vmatprep.subr.mxu0 0.0
    %128 = vmatpush2.msra.mxu0 0.0
    %129 = vmatprep.subr.mxu0 0.0
    %130 = vmatpush2.msra.mxu0 0.0
    %131 = vmatprep.subr.mxu0 0.0
    %132 = vmatpush2.msra.mxu0 0.0
    %133 = vmatprep.subr.mxu0 0.0
    %134 = vmatpush2.msra.mxu0 0.0
    %135 = vmatprep.subr.mxu0 0.0
    %136 = vmatpush2.msra.mxu0 0.0
    %137 = vmatprep.subr.mxu0 0.0
    %138 = vmatpush2.msra.mxu0 0.0
    %139 = vmatprep.subr.mxu0 0.0
    %140 = vmatpush2.msra.mxu0 0.0
    %141 = vmatprep.subr.mxu0 0.0
    %142 = vmatpush2.msra.mxu0 0.0
    %143 = vmatprep.subr.mxu0 0.0
    %144 = vmatpush2.msra.mxu0 0.0
    %145 = vmatprep.subr.mxu0 0.0
    %146 = vmatpush2.msra.mxu0 0.0
    %147 = vmatprep.subr.mxu0 0.0
    %148 = vmatpush2.msra.mxu0 0.0
    %149 = vmatprep.subr.mxu0 0.0
    %150 = vmatpush2.msra.mxu0 0.0
    %151 = vmatprep.subr.mxu0 0.0
    %152 = vmatpush2.msra.mxu0 0.0
    %153 = vmatprep.subr.mxu0 0.0
    %154 = vmatpush2.msra.mxu0 0.0
    %155 = vmatprep.subr.mxu0 0.0
    %156 = vmatpush2.msra.mxu0 0.0
    %157 = vmatprep.subr.mxu0 0.0
    %158 = vmatpush2.msra.mxu0 0.0
    %159 = vmatprep.mubr.f32.mxu0 0.0
    %160 = vmatmul.mubr.f32.gmra.mxu0 %v80
    %v161 = vpop.f32.mrf.mxu0
    %v162 = vadd.f32 0.0, %v161
    %v163 = vpop.f32.mrf.mxu0
    %164 = vmatprep.mubr.f32.mxu0 0.0
    %165 = vmatmul.mubr.f32.gmra.mxu0 %v83
    %v166 = vpop.f32.mrf.mxu0
    %v167 = vadd.f32 0.0, %v166
    %v168 = vpop.f32.mrf.mxu0
    %169 = vmatprep.mubr.f32.mxu0 0.0
    %170 = vmatmul.mubr.f32.gmra.mxu0 %v86
    %v171 = vpop.f32.mrf.mxu0
    %v172 = vadd.f32 0.0, %v171
    %v173 = vpop.f32.mrf.mxu0
    %174 = vmatprep.mubr.f32.mxu0 0.0
    %175 = vmatmul.mubr.f32.gmra.mxu0 %v89
    %v176 = vpop.f32.mrf.mxu0
    %v177 = vadd.f32 0.0, %v176
    %v178 = vpop.f32.mrf.mxu0
    %179 = vdwg.mxu0
    %v180 = vmax.f32 %v162, 0.0
    %v181 = vmax.f32 %v167, 0.0
    %v182 = vmax.f32 %v172, 0.0
    %v183 = vmax.f32 %v177, 0.0
    %185 = vset.pattern.permute.xlu0 32
    %186 = vperm.xlu0 %185, %v52
    %v187 = vpop.permute.xlu0 %186
    %vm189 = vcmask 261120
    %v190 = vsel %vm189, %v52, 0
    %192 = vmatprep.subr.mxu0 0.0
    %193 = vmatpush1.msra.mxu0 0.0
    %194 = vmatprep.subr.mxu0 0.0
    %195 = vmatpush1.msra.mxu0 0.0
    %196 = vmatprep.subr.mxu0 0.0
    %197 = vmatpush1.msra.mxu0 0.0
    %198 = vmatprep.subr.mxu0 0.0
    %199 = vmatpush1.msra.mxu0 0.0
    %200 = vmatprep.subr.mxu0 0.0
    %201 = vmatpush1.msra.mxu0 0.0
    %202 = vmatprep.subr.mxu0 0.0
    %203 = vmatpush1.msra.mxu0 0.0
    %204 = vmatprep.subr.mxu0 0.0
    %205 = vmatpush1.msra.mxu0 0.0
    %206 = vmatprep.subr.mxu0 0.0
    %207 = vmatpush1.msra.mxu0 0.0
    %208 = vmatprep.subr.mxu0 0.0
    %209 = vmatpush1.msra.mxu0 0.0
    %210 = vmatprep.subr.mxu0 0.0
    %211 = vmatpush1.msra.mxu0 0.0
    %212 = vmatprep.subr.mxu0 0.0
    %213 = vmatpush1.msra.mxu0 0.0
    %214 = vmatprep.subr.mxu0 0.0
    %215 = vmatpush1.msra.mxu0 0.0
    %216 = vmatprep.subr.mxu0 0.0
    %217 = vmatpush1.msra.mxu0 %v183
    %218 = vmatprep.subr.mxu0 0.0
    %219 = vmatpush1.msra.mxu0 %v182
    %220 = vmatprep.subr.mxu0 0.0
    %221 = vmatpush1.msra.mxu0 %v181
    %222 = vmatprep.subr.mxu0 0.0
    %223 = vmatpush1.msra.mxu0 %v180
    %224 = vmatprep.subr.mxu0 0.0
    %225 = vmatpush2.msra.mxu0 0.0
    %226 = vmatprep.subr.mxu0 0.0
    %227 = vmatpush2.msra.mxu0 0.0
    %228 = vmatprep.subr.mxu0 0.0
    %229 = vmatpush2.msra.mxu0 0.0
    %230 = vmatprep.subr.mxu0 0.0
    %231 = vmatpush2.msra.mxu0 0.0
    %232 = vmatprep.subr.mxu0 0.0
    %233 = vmatpush2.msra.mxu0 0.0
    %234 = vmatprep.subr.mxu0 0.0
    %235 = vmatpush2.msra.mxu0 0.0
    %236 = vmatprep.subr.mxu0 0.0
    %237 = vmatpush2.msra.mxu0 0.0
    %238 = vmatprep.subr.mxu0 0.0
    %239 = vmatpush2.msra.mxu0 0.0
    %240 = vmatprep.subr.mxu0 0.0
    %241 = vmatpush2.msra.mxu0 0.0
    %242 = vmatprep.subr.mxu0 0.0
    %243 = vmatpush2.msra.mxu0 0.0
    %244 = vmatprep.subr.mxu0 0.0
    %245 = vmatpush2.msra.mxu0 0.0
    %246 = vmatprep.subr.mxu0 0.0
    %247 = vmatpush2.msra.mxu0 0.0
    %248 = vmatprep.subr.mxu0 0.0
    %249 = vmatpush2.msra.mxu0 0.0
    %250 = vmatprep.subr.mxu0 0.0
    %251 = vmatpush2.msra.mxu0 0.0
    %252 = vmatprep.subr.mxu0 0.0
    %253 = vmatpush2.msra.mxu0 0.0
    %254 = vmatprep.subr.mxu0 0.0
    %255 = vmatpush2.msra.mxu0 0.0
    %256 = vmatprep.mubr.f32.mxu0 0.0
    %257 = vmatmul.mubr.f32.gmra.mxu0 %v190
    %v258 = vpop.f32.mrf.mxu0
    %v259 = vadd.f32 %v187, %v258
    %v260 = vpop.f32.mrf.mxu0
    %261 = vdwg.mxu0
    %v262 = vxor.u32 %v259, 2147483648
    %v263 = vmul.f32 %v262, 1.442695
    %v264 = vpow.pop %v263
    %v265 = vadd.f32 %v264, 1.0
    %v266 = vrcp.pop %v265
    %v267 = vmul.f32 1.0, %v266
    %268 = vst [vmem:[%s4] sm:$0x1f] %v267
    // Predicated region
    $region26: #{_lambda_.1} parent=1 // pred_check
      _
    $region27: #{_lambda_.1} parent=1 // pred_check_branch
      %270 = sbr.rel (0) target = $region29
    $region28: #{_lambda_.1} parent=1 // pred_region
      _
    $region29: #{_lambda_.1} parent=1 // pred_fallthru
      _
    // Predicated region
    $region30: #{_lambda_.1} parent=1 // pred_check
      _
    $region31: #{_lambda_.1} parent=1 // pred_check_branch
      %272 = sbr.rel (0) target = $region33
    $region32: #{_lambda_.1} parent=1 // pred_region
      _
    $region33: #{_lambda_.1} parent=1 // pred_fallthru
      _
    %273 = vsyncpa [#allocation3], 1
    %274 = vsyncpa [#allocation4], 1

</llo_original>
